<compile_context>
chip_gen: v5e
topology: v5e:2x2
jax: 0.10.0
libtpu: 0.0.40
codegen_flags: <defaults>
</compile_context>

<pallas_src>
import jax
import jax.numpy as jnp
from jax.experimental import pallas as pl
from jax.experimental.pallas import tpu as pltpu


def _round_up(a, m):
    return ((a + m - 1) // m) * m


def cls_head_kernel(x_ref,
                    w1_ref, b1_ref,
                    w2_ref, b2_ref,
                    w3_ref, b3_ref,
                    o_ref):
    # Layer 1: Linear (BN folded into W/b) -> ReLU.  bf16 operands, f32 accumulate.
    h1 = jnp.dot(x_ref[...], w1_ref[...], preferred_element_type=jnp.float32)
    h1 = jnp.maximum(h1 + b1_ref[...], 0.0)

    # Layer 2: Linear (BN folded) -> ReLU
    h2 = jnp.dot(h1.astype(jnp.bfloat16), w2_ref[...],
                 preferred_element_type=jnp.float32)
    h2 = jnp.maximum(h2 + b2_ref[...], 0.0)

    # Layer 3: Linear (logits, lane-padded to 128 columns)
    out = jnp.dot(h2.astype(jnp.bfloat16), w3_ref[...],
                  preferred_element_type=jnp.float32)
    o_ref[...] = out + b3_ref[...]


def cls_head_forward(x, folded_params, level_cluster, tn=512):
    """x: [N, in_channels] float32.  Returns [N, level_cluster] float32."""
    w1, b1, w2, b2, w3, b3 = folded_params
    n, cin = x.shape
    c1 = w1.shape[1]
    c2 = w2.shape[1]
    c3 = w3.shape[1]          # lane-padded output width (multiple of 128)

    # Batch tile: multiple of 8, at most `tn`; pad N up to a whole number of tiles.
    tn_eff = min(tn, _round_up(n, 8))
    n_pad = _round_up(n, tn_eff)

    xb = x.astype(jnp.bfloat16)
    if n_pad != n:
        xb = jnp.pad(xb, ((0, n_pad - n), (0, 0)))

    grid = (n_pad // tn_eff,)

    out = pl.pallas_call(
        cls_head_kernel,
        out_shape=jax.ShapeDtypeStruct((n_pad, c3), jnp.float32),
        grid=grid,
        in_specs=[
            pl.BlockSpec((tn_eff, cin), lambda i: (i, 0)),   # x: tiled over batch
            pl.BlockSpec((cin, c1),     lambda i: (0, 0)),   # weights/biases resident
            pl.BlockSpec((1, c1),       lambda i: (0, 0)),
            pl.BlockSpec((c1, c2),      lambda i: (0, 0)),
            pl.BlockSpec((1, c2),       lambda i: (0, 0)),
            pl.BlockSpec((c2, c3),      lambda i: (0, 0)),
            pl.BlockSpec((1, c3),       lambda i: (0, 0)),
        ],
        out_specs=pl.BlockSpec((tn_eff, c3), lambda i: (i, 0)),
        compiler_params=pltpu.CompilerParams(
            dimension_semantics=("parallel",)),
    )(xb, w1, b1, w2, b2, w3, b3)

    return out[:n, :level_cluster]


def make_params(key, in_channels, level_cluster):
    """Deterministic synthetic parameters mirroring Cls_Head.__init__ shapes."""
    channels_c = [512, 256, level_cluster]
    dims = [in_channels] + channels_c
    keys = jax.random.split(key, 12)

    def linear(kw, kb, cin, cout):
        # PyTorch Linear weight is [out, in]; we keep the transposed [in, out] form.
        w = jax.random.normal(kw, (cin, cout), jnp.float32) * 0.02
        b = jax.random.normal(kb, (1, cout), jnp.float32) * 0.01
        return w, b

    def bn_fold(kg, kb, c, eps=1e-5):
        gamma = 1.0 + 0.1 * jax.random.normal(kg, (1, c), jnp.float32)
        beta = 0.1 * jax.random.normal(kb, (1, c), jnp.float32)
        running_mean = jnp.zeros((1, c), jnp.float32)
        running_var = jnp.ones((1, c), jnp.float32)
        scale = gamma / jnp.sqrt(running_var + eps)
        shift = beta - running_mean * scale
        return scale, shift

    w1, b1 = linear(keys[0], keys[1], dims[0], dims[1])
    s1, t1 = bn_fold(keys[2], keys[3], dims[1])
    w2, b2 = linear(keys[4], keys[5], dims[1], dims[2])
    s2, t2 = bn_fold(keys[6], keys[7], dims[2])
    w3, b3 = linear(keys[8], keys[9], dims[2], dims[3])
    return (w1, b1, s1, t1, w2, b2, s2, t2, w3, b3)


def fold_params(raw, lane_pad=128):
    """Fold BN into Linear (W' = W*s, b' = b*s + t), cast weights to bf16, and
    zero-pad the final layer's output width to a multiple of `lane_pad`."""
    (w1, b1, s1, t1, w2, b2, s2, t2, w3, b3) = raw
    w1f = (w1 * s1).astype(jnp.bfloat16)
    b1f = (b1 * s1 + t1).astype(jnp.float32)
    w2f = (w2 * s2).astype(jnp.bfloat16)
    b2f = (b2 * s2 + t2).astype(jnp.float32)
    cout = w3.shape[1]
    pad = _round_up(cout, lane_pad) - cout
    w3p = jnp.pad(w3, ((0, 0), (0, pad))).astype(jnp.bfloat16)
    b3p = jnp.pad(b3, ((0, 0), (0, pad))).astype(jnp.float32)
    return (w1f, b1f, w2f, b2f, w3p, b3p)


def cls_head_reference_bf16(x, folded_params):
    """Same numerics as the kernel (bf16 operands, f32 accumulation), in plain JAX."""
    w1, b1, w2, b2, w3, b3 = folded_params
    xb = x.astype(jnp.bfloat16)
    h1 = jnp.maximum(jnp.dot(xb, w1, preferred_element_type=jnp.float32) + b1, 0.0)
    h2 = jnp.maximum(jnp.dot(h1.astype(jnp.bfloat16), w2,
                             preferred_element_type=jnp.float32) + b2, 0.0)
    return jnp.dot(h2.astype(jnp.bfloat16), w3,
                   preferred_element_type=jnp.float32) + b3


def cls_head_reference_f32(x, raw):
    """Original (unfolded) f32 eval-mode forward for semantic sanity check."""
    (w1, b1, s1, t1, w2, b2, s2, t2, w3, b3) = raw
    h1 = jnp.maximum((x @ w1 + b1) * s1 + t1, 0.0)
    h2 = jnp.maximum((h1 @ w2 + b2) * s2 + t2, 0.0)
    return h2 @ w3 + b3


if __name__ == "__main__":
    key = jax.random.PRNGKey(0)
    k_x, k_p = jax.random.split(key)

    batch = 8
    in_channels = 32          # small, consistent with configurable Cls_Head(in_channels=...)
    level_cluster = 25        # module default

    x = jax.random.normal(k_x, (batch, in_channels), jnp.float32)
    raw = make_params(k_p, in_channels, level_cluster)
    folded = fold_params(raw)

    out = cls_head_forward(x, folded, level_cluster)
    out = jax.block_until_ready(out)
    assert out.shape == (batch, level_cluster)

    # Tight check against a reference with identical bf16/f32 numerics.
    ref_bf16 = cls_head_reference_bf16(x, folded)[:, :level_cluster]
    assert jnp.allclose(out, ref_bf16, atol=2e-3, rtol=2e-3)

    # Loose check against the original f32 (unfolded BN) math.
    ref_f32 = cls_head_reference_f32(x, raw)
    assert jnp.allclose(out, ref_f32, atol=5e-2, rtol=5e-2)

    print("KERNEL_OK")
</pallas_src>

<mosaic_0001>
module attributes {stable_mosaic.version = 11 : i64} {
  func.func @cls_head_kernel(%arg0: i32, %arg1: memref<8x32xbf16, #tpu.memory_space<vmem>>, %arg2: memref<32x512xbf16, #tpu.memory_space<vmem>>, %arg3: memref<1x512xf32, #tpu.memory_space<vmem>>, %arg4: memref<512x256xbf16, #tpu.memory_space<vmem>>, %arg5: memref<1x256xf32, #tpu.memory_space<vmem>>, %arg6: memref<256x128xbf16, #tpu.memory_space<vmem>>, %arg7: memref<1x128xf32, #tpu.memory_space<vmem>>, %arg8: memref<8x128xf32, #tpu.memory_space<vmem>>) attributes {dimension_semantics = [#tpu.dimension_semantics<parallel>], iteration_bounds = array<i64: 1>, scalar_prefetch = 0 : i64, scratch_operands = 0 : i64, tpu.core_type = #tpu.core_type<tc>, window_params = [{transform_indices = @transform_0, window_bounds = array<i64: 8, 32>}, {pipeline_mode = #tpu.pipeline_mode<synchronous>, transform_indices = @transform_1, window_bounds = array<i64: 32, 512>}, {pipeline_mode = #tpu.pipeline_mode<synchronous>, transform_indices = @transform_2, window_bounds = array<i64: 1, 512>}, {pipeline_mode = #tpu.pipeline_mode<synchronous>, transform_indices = @transform_3, window_bounds = array<i64: 512, 256>}, {pipeline_mode = #tpu.pipeline_mode<synchronous>, transform_indices = @transform_4, window_bounds = array<i64: 1, 256>}, {pipeline_mode = #tpu.pipeline_mode<synchronous>, transform_indices = @transform_5, window_bounds = array<i64: 256, 128>}, {pipeline_mode = #tpu.pipeline_mode<synchronous>, transform_indices = @transform_6, window_bounds = array<i64: 1, 128>}, {transform_indices = @transform_7, window_bounds = array<i64: 8, 128>}]} {
    %c0 = arith.constant 0 : index
    %c0_0 = arith.constant 0 : index
    %0 = vector.load %arg1[%c0, %c0_0] : memref<8x32xbf16, #tpu.memory_space<vmem>>, vector<8x32xbf16>
    %c0_1 = arith.constant 0 : index
    %c0_2 = arith.constant 0 : index
    %1 = vector.load %arg2[%c0_1, %c0_2] : memref<32x512xbf16, #tpu.memory_space<vmem>>, vector<32x512xbf16>
    %cst = arith.constant dense<0.000000e+00> : vector<8x512xf32>
    %2 = tpu.matmul %0, %1, %cst {dimension_numbers = #tpu.dot_dimension_numbers<[1], [0], [0], [1], [0, 0, 1, 1], [], []>} : vector<8x32xbf16>, vector<32x512xbf16>, vector<8x512xf32> -> vector<8x512xf32>
    %c0_3 = arith.constant 0 : index
    %c0_4 = arith.constant 0 : index
    %3 = vector.load %arg3[%c0_3, %c0_4] : memref<1x512xf32, #tpu.memory_space<vmem>>, vector<1x512xf32>
    %4 = vector.broadcast %3 : vector<1x512xf32> to vector<8x512xf32>
    %5 = arith.addf %2, %4 : vector<8x512xf32>
    %cst_5 = arith.constant 0.000000e+00 : f32
    %6 = vector.broadcast %cst_5 : f32 to vector<8x512xf32>
    %7 = arith.maximumf %5, %6 : vector<8x512xf32>
    %8 = arith.truncf %7 : vector<8x512xf32> to vector<8x512xbf16>
    %c0_6 = arith.constant 0 : index
    %c0_7 = arith.constant 0 : index
    %9 = vector.load %arg4[%c0_6, %c0_7] : memref<512x256xbf16, #tpu.memory_space<vmem>>, vector<512x256xbf16>
    %cst_8 = arith.constant dense<0.000000e+00> : vector<8x256xf32>
    %10 = tpu.matmul %8, %9, %cst_8 {dimension_numbers = #tpu.dot_dimension_numbers<[1], [0], [0], [1], [0, 0, 1, 1], [], []>} : vector<8x512xbf16>, vector<512x256xbf16>, vector<8x256xf32> -> vector<8x256xf32>
    %c0_9 = arith.constant 0 : index
    %c0_10 = arith.constant 0 : index
    %11 = vector.load %arg5[%c0_9, %c0_10] : memref<1x256xf32, #tpu.memory_space<vmem>>, vector<1x256xf32>
    %12 = vector.broadcast %11 : vector<1x256xf32> to vector<8x256xf32>
    %13 = arith.addf %10, %12 : vector<8x256xf32>
    %cst_11 = arith.constant 0.000000e+00 : f32
    %14 = vector.broadcast %cst_11 : f32 to vector<8x256xf32>
    %15 = arith.maximumf %13, %14 : vector<8x256xf32>
    %16 = arith.truncf %15 : vector<8x256xf32> to vector<8x256xbf16>
    %c0_12 = arith.constant 0 : index
    %c0_13 = arith.constant 0 : index
    %17 = vector.load %arg6[%c0_12, %c0_13] : memref<256x128xbf16, #tpu.memory_space<vmem>>, vector<256x128xbf16>
    %cst_14 = arith.constant dense<0.000000e+00> : vector<8x128xf32>
    %18 = tpu.matmul %16, %17, %cst_14 {dimension_numbers = #tpu.dot_dimension_numbers<[1], [0], [0], [1], [0, 0, 1, 1], [], []>} : vector<8x256xbf16>, vector<256x128xbf16>, vector<8x128xf32> -> vector<8x128xf32>
    %c0_15 = arith.constant 0 : index
    %c0_16 = arith.constant 0 : index
    %19 = vector.load %arg7[%c0_15, %c0_16] : memref<1x128xf32, #tpu.memory_space<vmem>>, vector<1x128xf32>
    %20 = vector.broadcast %19 : vector<1x128xf32> to vector<8x128xf32>
    %21 = arith.addf %18, %20 : vector<8x128xf32>
    %c0_17 = arith.constant 0 : index
    %c0_18 = arith.constant 0 : index
    %22 = vector.load %arg8[%c0_17, %c0_18] : memref<8x128xf32, #tpu.memory_space<vmem>>, vector<8x128xf32>
    tpu.vector_store %arg8[%c0_17, %c0_18], %21 {strides = array<i32>} : memref<8x128xf32, #tpu.memory_space<vmem>>, vector<8x128xf32>,
    return
  }
  func.func @transform_0(%arg0: i32) -> (i32, i32) {
    %c0_i32 = arith.constant 0 : i32
    %c0_i32_0 = arith.constant 0 : i32
    return %arg0, %c0_i32 : i32, i32
  }
  func.func @transform_1(%arg0: i32) -> (i32, i32) {
    %c0_i32 = arith.constant 0 : i32
    %c0_i32_0 = arith.constant 0 : i32
    %c0_i32_1 = arith.constant 0 : i32
    return %c0_i32, %c0_i32_0 : i32, i32
  }
  func.func @transform_2(%arg0: i32) -> (i32, i32) {
    %c0_i32 = arith.constant 0 : i32
    %c0_i32_0 = arith.constant 0 : i32
    %c0_i32_1 = arith.constant 0 : i32
    return %c0_i32, %c0_i32_0 : i32, i32
  }
  func.func @transform_3(%arg0: i32) -> (i32, i32) {
    %c0_i32 = arith.constant 0 : i32
    %c0_i32_0 = arith.constant 0 : i32
    %c0_i32_1 = arith.constant 0 : i32
    return %c0_i32, %c0_i32_0 : i32, i32
  }
  func.func @transform_4(%arg0: i32) -> (i32, i32) {
    %c0_i32 = arith.constant 0 : i32
    %c0_i32_0 = arith.constant 0 : i32
    %c0_i32_1 = arith.constant 0 : i32
    return %c0_i32, %c0_i32_0 : i32, i32
  }
  func.func @transform_5(%arg0: i32) -> (i32, i32) {
    %c0_i32 = arith.constant 0 : i32
    %c0_i32_0 = arith.constant 0 : i32
    %c0_i32_1 = arith.constant 0 : i32
    return %c0_i32, %c0_i32_0 : i32, i32
  }
  func.func @transform_6(%arg0: i32) -> (i32, i32) {
    %c0_i32 = arith.constant 0 : i32
    %c0_i32_0 = arith.constant 0 : i32
    %c0_i32_1 = arith.constant 0 : i32
    return %c0_i32, %c0_i32_0 : i32, i32
  }
  func.func @transform_7(%arg0: i32) -> (i32, i32) {
    %c0_i32 = arith.constant 0 : i32
    %c0_i32_0 = arith.constant 0 : i32
    return %arg0, %c0_i32 : i32, i32
  }
}

</mosaic_0001>

<llo_original>
// kernel: tpu_custom_call.1
$region0: #{tpu_custom_call.1}
  #allocation0 [shape = 'u32[]', space=smem, size = 0x4, offset = 0x4, fixed_abs, tag = 'smem constant byte address 0x4 - core index']
  #allocation1 [shape = 'u32[72,128]{1,0:T(1,128)}', space=vmem, size = 0x9000, scoped, tag = 'internal scratch']
  %s0 = inlined_call_operand.hbm [shape: bf16[8,32], index: 0, kind: input, shape index: {}]
  %s1 = inlined_call_operand.hbm [shape: bf16[32,512], index: 1, kind: input, shape index: {}]
  %s2 = inlined_call_operand.hbm [shape: f32[1,512], index: 2, kind: input, shape index: {}]
  %s3 = inlined_call_operand.hbm [shape: bf16[512,256], index: 3, kind: input, shape index: {}]
  %s4 = inlined_call_operand.vmem [shape: f32[1,256], index: 4, kind: input, shape index: {}]
  %s5 = inlined_call_operand.hbm [shape: bf16[256,128], index: 5, kind: input, shape index: {}]
  %s6 = inlined_call_operand.vmem [shape: f32[1,128], index: 6, kind: input, shape index: {}]
  %s7 = inlined_call_operand.hbm [shape: f32[8,128], index: 7, kind: output, shape index: {}]
  %s8 = sld [smem:[#allocation0]]
  $region58: #{tpu_custom_call.1} parent=0
    _
  %s10 = ssub.s32 1, %s8
  %s11 = scalar_select 0, %s10, %s8
  $region1: #{tpu_custom_call.1} parent=0
    #allocation2 [shape = 'u8[2048]{0}', space=vmem, size = 0x800, scoped, tag = 'input window, operand 0, single buffered']
    #allocation3 [shape = 's32[1]{0}', space=sflag, size = 0x4, scoped, tag = 'scoped memory for tpu_custom_call.1']
    #allocation4 [shape = 's32[1]{0}', space=sflag, size = 0x4, scoped, tag = 'scoped memory for tpu_custom_call.1']
    #allocation5 [shape = 'u8[32768]{0}', space=vmem, size = 0x8000, scoped, tag = 'input window, operand 1, single buffered']
    #allocation6 [shape = 's32[1]{0}', space=sflag, size = 0x4, scoped, tag = 'scoped memory for tpu_custom_call.1']
    #allocation7 [shape = 'u8[2048]{0}', space=vmem, size = 0x800, scoped, tag = 'input window, operand 2, single buffered']
    #allocation8 [shape = 'u8[262144]{0}', space=vmem, size = 0x40000, scoped, tag = 'input window, operand 3, single buffered']
    #allocation9 [shape = 's32[1]{0}', space=sflag, size = 0x4, scoped, tag = 'scoped memory for tpu_custom_call.1']
    #allocation10 [shape = 'u8[65536]{0}', space=vmem, size = 0x10000, scoped, tag = 'input window, operand 5, single buffered']
    #allocation11 [shape = 'u8[4096]{0}', space=vmem, size = 0x1000, scoped, tag = 'output window, operand 0, single buffered']
    %12 = vsyncpa [#allocation3], 0
    %13 = vsyncpa [#allocation6], 0
    %14 = vsyncpa [#allocation9], 0
    %15 = vsyncpa [#allocation4], 0
    // Predicated region
    $region2: #{tpu_custom_call.1} parent=1 // pred_check
      _
    $region3: #{tpu_custom_call.1} parent=1 // pred_check_branch
      %17 = sbr.rel (0) target = $region5
    $region4: #{tpu_custom_call.1} parent=1 // pred_region
      %19 = vsyncadd [#allocation3], 0
      %s21 = sshll.u32 %s0, 4
      %s22 = int_to_ptr.hbm [resolvable:$true] %s21
      %s23 = sshll.u32 [#allocation2], 4
      %s24 = int_to_ptr.vmem [resolvable:$true] %s23
      %26 = dma.hbm_to_vmem [thread:$0]  %s22, 64, %s24, [#allocation3]
    $region5: #{tpu_custom_call.1} parent=1 // pred_fallthru
      _
    // Predicated region
    $region6: #{tpu_custom_call.1} parent=1 // pred_check
      _
    $region7: #{tpu_custom_call.1} parent=1 // pred_check_branch
      %28 = sbr.rel (0) target = $region9
    $region8: #{tpu_custom_call.1} parent=1 // pred_region
      %30 = vsyncadd [#allocation6], 0
      %s31 = sshll.u32 %s1, 4
      %s32 = int_to_ptr.hbm [resolvable:$true] %s31
      %s33 = sshll.u32 [#allocation5], 4
      %s34 = int_to_ptr.vmem [resolvable:$true] %s33
      %39 = dma.hbm_to_vmem [thread:$0]  %s32, 1024, %s34, [#allocation6], 256, 256, 16
    $region9: #{tpu_custom_call.1} parent=1 // pred_fallthru
      _
    // Predicated region
    $region10: #{tpu_custom_call.1} parent=1 // pred_check
      _
    $region11: #{tpu_custom_call.1} parent=1 // pred_check_branch
      %41 = sbr.rel (0) target = $region13
    $region12: #{tpu_custom_call.1} parent=1 // pred_region
      %43 = vsyncadd [#allocation6], 0
      %s45 = sshll.u32 %s2, 4
      %s46 = int_to_ptr.hbm [resolvable:$true] %s45
      %s47 = sshll.u32 [#allocation7], 4
      %s48 = int_to_ptr.vmem [resolvable:$true] %s47
      %50 = dma.hbm_to_vmem [thread:$0]  %s46, 64, %s48, [#allocation6]
    $region13: #{tpu_custom_call.1} parent=1 // pred_fallthru
      _
    // Predicated region
    $region14: #{tpu_custom_call.1} parent=1 // pred_check
      _
    $region15: #{tpu_custom_call.1} parent=1 // pred_check_branch
      %52 = sbr.rel (0) target = $region17
    $region16: #{tpu_custom_call.1} parent=1 // pred_region
      %54 = vsyncadd [#allocation9], 0
      %s55 = sshll.u32 %s3, 4
      %s56 = int_to_ptr.hbm [resolvable:$true] %s55
      %s57 = sshll.u32 [#allocation8], 4
      %s58 = int_to_ptr.vmem [resolvable:$true] %s57
      %63 = dma.hbm_to_vmem [thread:$0]  %s56, 8192, %s58, [#allocation9], 128, 128, 8
    $region17: #{tpu_custom_call.1} parent=1 // pred_fallthru
      _
    // Predicated region
    $region18: #{tpu_custom_call.1} parent=1 // pred_check
      _
    $region19: #{tpu_custom_call.1} parent=1 // pred_check_branch
      %65 = sbr.rel (0) target = $region21
    $region20: #{tpu_custom_call.1} parent=1 // pred_region
      _
    $region21: #{tpu_custom_call.1} parent=1 // pred_fallthru
      _
    // Predicated region
    $region22: #{tpu_custom_call.1} parent=1 // pred_check
      _
    $region23: #{tpu_custom_call.1} parent=1 // pred_check_branch
      %67 = sbr.rel (0) target = $region25
    $region24: #{tpu_custom_call.1} parent=1 // pred_region
      %69 = vsyncadd [#allocation9], 0
      %s70 = sshll.u32 %s5, 4
      %s71 = int_to_ptr.hbm [resolvable:$true] %s70
      %s72 = sshll.u32 [#allocation10], 4
      %s73 = int_to_ptr.vmem [resolvable:$true] %s72
      %78 = dma.hbm_to_vmem [thread:$0]  %s71, 2048, %s73, [#allocation9], 64, 64, 4
    $region25: #{tpu_custom_call.1} parent=1 // pred_fallthru
      _
    // Predicated region
    $region26: #{tpu_custom_call.1} parent=1 // pred_check
      _
    $region27: #{tpu_custom_call.1} parent=1 // pred_check_branch
      %80 = sbr.rel (0) target = $region29
    $region28: #{tpu_custom_call.1} parent=1 // pred_region
      _
    $region29: #{tpu_custom_call.1} parent=1 // pred_fallthru
      _
    // Predicated region
    $region30: #{tpu_custom_call.1} parent=1 // pred_check
      _
    $region31: #{tpu_custom_call.1} parent=1 // pred_check_branch
      %82 = sbr.rel (0) target = $region33
    $region32: #{tpu_custom_call.1} parent=1 // pred_region
      %84 = dma.done [#allocation3], 64
    $region33: #{tpu_custom_call.1} parent=1 // pred_fallthru
      _
    // Predicated region
    $region34: #{tpu_custom_call.1} parent=1 // pred_check
      _
    $region35: #{tpu_custom_call.1} parent=1 // pred_check_branch
      %86 = sbr.rel (0) target = $region37
    $region36: #{tpu_custom_call.1} parent=1 // pred_region
      %88 = dma.done [#allocation6], 1024
    $region37: #{tpu_custom_call.1} parent=1 // pred_fallthru
      _
    // Predicated region
    $region38: #{tpu_custom_call.1} parent=1 // pred_check
      _
    $region39: #{tpu_custom_call.1} parent=1 // pred_check_branch
      %90 = sbr.rel (0) target = $region41
    $region40: #{tpu_custom_call.1} parent=1 // pred_region
      %92 = dma.done [#allocation6], 64
    $region41: #{tpu_custom_call.1} parent=1 // pred_fallthru
      _
    // Predicated region
    $region42: #{tpu_custom_call.1} parent=1 // pred_check
      _
    $region43: #{tpu_custom_call.1} parent=1 // pred_check_branch
      %94 = sbr.rel (0) target = $region45
    $region44: #{tpu_custom_call.1} parent=1 // pred_region
      %96 = dma.done [#allocation9], 8192
    $region45: #{tpu_custom_call.1} parent=1 // pred_fallthru
      _
    // Predicated region
    $region46: #{tpu_custom_call.1} parent=1 // pred_check
      _
    $region47: #{tpu_custom_call.1} parent=1 // pred_check_branch
      %98 = sbr.rel (0) target = $region49
    $region48: #{tpu_custom_call.1} parent=1 // pred_region
      %100 = dma.done [#allocation9], 2048
    $region49: #{tpu_custom_call.1} parent=1 // pred_fallthru
      _
    %v102 = vld [vmem:[#allocation2] sm:$0xf]
    %v103 = vld [vmem:[#allocation5] sm:$0xff]
    %v104 = vld [vmem:[#allocation5 + $0x8] sm:$0xff]
    %v105 = vld [vmem:[#allocation5 + $0x10] sm:$0xff]
    %v106 = vld [vmem:[#allocation5 + $0x18] sm:$0xff]
    %v107 = vld [vmem:[#allocation5 + $0x20] sm:$0xff]
    %v108 = vld [vmem:[#allocation5 + $0x28] sm:$0xff]
    %v109 = vld [vmem:[#allocation5 + $0x30] sm:$0xff]
    %v110 = vld [vmem:[#allocation5 + $0x38] sm:$0xff]
    %v111 = vld [vmem:[#allocation7] sm:$0xf]
    %v113 = vperm.slane %v111, 0
    %v114 = vperm.slane %v111, 1
    %v115 = vperm.slane %v111, 2
    %v116 = vperm.slane %v111, 3
    %v129 = vunpack.c.l.b16 %v103
    %v130 = vunpack.c.h.b16 %v103
    %v131 = vunpack.c.l.b16 %v104
    %v132 = vunpack.c.h.b16 %v104
    %v133 = vunpack.c.l.b16 %v105
    %v134 = vunpack.c.h.b16 %v105
    %v135 = vunpack.c.l.b16 %v106
    %v136 = vunpack.c.h.b16 %v106
    %v137 = vunpack.c.l.b16 %v107
    %v138 = vunpack.c.h.b16 %v107
    %v139 = vunpack.c.l.b16 %v108
    %v140 = vunpack.c.h.b16 %v108
    %v141 = vunpack.c.l.b16 %v109
    %v142 = vunpack.c.h.b16 %v109
    %v143 = vunpack.c.l.b16 %v110
    %v144 = vunpack.c.h.b16 %v110
    %v145 = vpack.c.b16 %v133, %v129
    %v146 = vpack.c.b16 %v134, %v130
    %v147 = vpack.c.b16 %v135, %v131
    %v148 = vpack.c.b16 %v136, %v132
    %v149 = vpack.c.b16 %v141, %v137
    %v150 = vpack.c.b16 %v142, %v138
    %v151 = vpack.c.b16 %v143, %v139
    %v152 = vpack.c.b16 %v144, %v140
    %vm161 = vcmask 261120
    %v163 = vsel %vm161, %v102, 0
    %165 = vmatpush.bf16.msra.mxu0 0
    %166 = vmatpush.bf16.msra.mxu0 0
    %167 = vmatpush.bf16.msra.mxu0 0
    %168 = vmatpush.bf16.msra.mxu0 0
    %169 = vmatpush.bf16.msra.mxu0 0
    %170 = vmatpush.bf16.msra.mxu0 0
    %171 = vmatpush.bf16.msra.mxu0 %v149
    %172 = vmatpush.bf16.msra.mxu0 %v145
    %173 = vmatmul.bf16.gmra.mxu0 %v163
    %v174 = vpop.f32.mrf.mxu0
    %v175 = vadd.f32 %v113, %v174
    %v176 = vpop.f32.mrf.mxu0
    %177 = vdwg.mxu0
    %178 = vmatpush.bf16.msra.mxu0 0
    %179 = vmatpush.bf16.msra.mxu0 0
    %180 = vmatpush.bf16.msra.mxu0 0
    %181 = vmatpush.bf16.msra.mxu0 0
    %182 = vmatpush.bf16.msra.mxu0 0
    %183 = vmatpush.bf16.msra.mxu0 0
    %184 = vmatpush.bf16.msra.mxu0 %v150
    %185 = vmatpush.bf16.msra.mxu0 %v146
    %186 = vmatmul.bf16.gmra.mxu0 %v163
    %v187 = vpop.f32.mrf.mxu0
    %v188 = vadd.f32 %v114, %v187
    %v189 = vpop.f32.mrf.mxu0
    %190 = vdwg.mxu0
    %191 = vmatpush.bf16.msra.mxu0 0
    %192 = vmatpush.bf16.msra.mxu0 0
    %193 = vmatpush.bf16.msra.mxu0 0
    %194 = vmatpush.bf16.msra.mxu0 0
    %195 = vmatpush.bf16.msra.mxu0 0
    %196 = vmatpush.bf16.msra.mxu0 0
    %197 = vmatpush.bf16.msra.mxu0 %v151
    %198 = vmatpush.bf16.msra.mxu0 %v147
    %199 = vmatmul.bf16.gmra.mxu0 %v163
    %v200 = vpop.f32.mrf.mxu0
    %v201 = vadd.f32 %v115, %v200
    %v202 = vpop.f32.mrf.mxu0
    %203 = vdwg.mxu0
    %204 = vmatpush.bf16.msra.mxu0 0
    %205 = vmatpush.bf16.msra.mxu0 0
    %206 = vmatpush.bf16.msra.mxu0 0
    %207 = vmatpush.bf16.msra.mxu0 0
    %208 = vmatpush.bf16.msra.mxu0 0
    %209 = vmatpush.bf16.msra.mxu0 0
    %210 = vmatpush.bf16.msra.mxu0 %v152
    %211 = vmatpush.bf16.msra.mxu0 %v148
    %212 = vmatmul.bf16.gmra.mxu0 %v163
    %v213 = vpop.f32.mrf.mxu0
    %v214 = vadd.f32 %v116, %v213
    %v215 = vpop.f32.mrf.mxu0
    %216 = vdwg.mxu0
    %v217 = vmax.f32 %v175, 0.0
    %v218 = vmax.f32 %v188, 0.0
    %v219 = vmax.f32 %v201, 0.0
    %v220 = vmax.f32 %v214, 0.0
    %v221 = vpack.c.bf16 %v217, %v217
    %v222 = vpack.c.bf16 %v218, %v218
    %v223 = vpack.c.bf16 %v219, %v219
    %v224 = vpack.c.bf16 %v220, %v220
    %v225 = vld [vmem:[#allocation8] sm:$0xff]
    %v226 = vld [vmem:[#allocation8 + $0x8] sm:$0xff]
    %v227 = vld [vmem:[#allocation8 + $0x10] sm:$0xff]
    %v228 = vld [vmem:[#allocation8 + $0x18] sm:$0xff]
    %v229 = vld [vmem:[#allocation8 + $0x20] sm:$0xff]
    %v230 = vld [vmem:[#allocation8 + $0x28] sm:$0xff]
    %v231 = vld [vmem:[#allocation8 + $0x30] sm:$0xff]
    %v232 = vld [vmem:[#allocation8 + $0x38] sm:$0xff]
    %v233 = vld [vmem:[#allocation8 + $0x40] sm:$0xff]
    %v234 = vld [vmem:[#allocation8 + $0x48] sm:$0xff]
    %v235 = vld [vmem:[#allocation8 + $0x50] sm:$0xff]
    %v236 = vld [vmem:[#allocation8 + $0x58] sm:$0xff]
    %v237 = vld [vmem:[#allocation8 + $0x60] sm:$0xff]
    %v238 = vld [vmem:[#allocation8 + $0x68] sm:$0xff]
    %v239 = vld [vmem:[#allocation8 + $0x70] sm:$0xff]
    %v240 = vld [vmem:[#allocation8 + $0x78] sm:$0xff]
    %v241 = vld [vmem:[#allocation8 + $0x80] sm:$0xff]
    %v242 = vld [vmem:[#allocation8 + $0x88] sm:$0xff]
    %v243 = vld [vmem:[#allocation8 + $0x90] sm:$0xff]
    %v244 = vld [vmem:[#allocation8 + $0x98] sm:$0xff]
    %v245 = vld [vmem:[#allocation8 + $0xa0] sm:$0xff]
    %v246 = vld [vmem:[#allocation8 + $0xa8] sm:$0xff]
    %v247 = vld [vmem:[#allocation8 + $0xb0] sm:$0xff]
    %v248 = vld [vmem:[#allocation8 + $0xb8] sm:$0xff]
    %v249 = vld [vmem:[#allocation8 + $0xc0] sm:$0xff]
    %v250 = vld [vmem:[#allocation8 + $0xc8] sm:$0xff]
    %v251 = vld [vmem:[#allocation8 + $0xd0] sm:$0xff]
    %v252 = vld [vmem:[#allocation8 + $0xd8] sm:$0xff]
    %v253 = vld [vmem:[#allocation8 + $0xe0] sm:$0xff]
    %v254 = vld [vmem:[#allocation8 + $0xe8] sm:$0xff]
    %v255 = vld [vmem:[#allocation8 + $0xf0] sm:$0xff]
    %v256 = vld [vmem:[#allocation8 + $0xf8] sm:$0xff]
    %v257 = vld [vmem:[#allocation8 + $0x100] sm:$0xff]
    %v258 = vld [vmem:[#allocation8 + $0x108] sm:$0xff]
    %v259 = vld [vmem:[#allocation8 + $0x110] sm:$0xff]
    %v260 = vld [vmem:[#allocation8 + $0x118] sm:$0xff]
    %v261 = vld [vmem:[#allocation8 + $0x120] sm:$0xff]
    %v262 = vld [vmem:[#allocation8 + $0x128] sm:$0xff]
    %v263 = vld [vmem:[#allocation8 + $0x130] sm:$0xff]
    %v264 = vld [vmem:[#allocation8 + $0x138] sm:$0xff]
    %v265 = vld [vmem:[#allocation8 + $0x140] sm:$0xff]
    %v266 = vld [vmem:[#allocation8 + $0x148] sm:$0xff]
    %v267 = vld [vmem:[#allocation8 + $0x150] sm:$0xff]
    %v268 = vld [vmem:[#allocation8 + $0x158] sm:$0xff]
    %v269 = vld [vmem:[#allocation8 + $0x160] sm:$0xff]
    %v270 = vld [vmem:[#allocation8 + $0x168] sm:$0xff]
    %v271 = vld [vmem:[#allocation8 + $0x170] sm:$0xff]
    %v272 = vld [vmem:[#allocation8 + $0x178] sm:$0xff]
    %v273 = vld [vmem:[#allocation8 + $0x180] sm:$0xff]
    %v274 = vld [vmem:[#allocation8 + $0x188] sm:$0xff]
    %v275 = vld [vmem:[#allocation8 + $0x190] sm:$0xff]
    %v276 = vld [vmem:[#allocation8 + $0x198] sm:$0xff]
    %v277 = vld [vmem:[#allocation8 + $0x1a0] sm:$0xff]
    %v278 = vld [vmem:[#allocation8 + $0x1a8] sm:$0xff]
    %v279 = vld [vmem:[#allocation8 + $0x1b0] sm:$0xff]
    %v280 = vld [vmem:[#allocation8 + $0x1b8] sm:$0xff]
    %v281 = vld [vmem:[#allocation8 + $0x1c0] sm:$0xff]
    %v282 = vld [vmem:[#allocation8 + $0x1c8] sm:$0xff]
    %v283 = vld [vmem:[#allocation8 + $0x1d0] sm:$0xff]
    %v284 = vld [vmem:[#allocation8 + $0x1d8] sm:$0xff]
    %v285 = vld [vmem:[#allocation8 + $0x1e0] sm:$0xff]
    %v286 = vld [vmem:[#allocation8 + $0x1e8] sm:$0xff]
    %v287 = vld [vmem:[#allocation8 + $0x1f0] sm:$0xff]
    %v288 = vld [vmem:[#allocation8 + $0x1f8] sm:$0xff]
    %v289 = vld [vmem:[%s4] sm:$0x3]
    %v291 = vperm.slane %v289, 0
    %v292 = vperm.slane %v289, 1
    %v359 = vunpack.c.l.b16 %v225
    %v360 = vunpack.c.h.b16 %v225
    %v361 = vunpack.c.l.b16 %v226
    %v362 = vunpack.c.h.b16 %v226
    %v363 = vunpack.c.l.b16 %v227
    %v364 = vunpack.c.h.b16 %v227
    %v365 = vunpack.c.l.b16 %v228
    %v366 = vunpack.c.h.b16 %v228
    %v367 = vunpack.c.l.b16 %v229
    %v368 = vunpack.c.h.b16 %v229
    %v369 = vunpack.c.l.b16 %v230
    %v370 = vunpack.c.h.b16 %v230
    %v371 = vunpack.c.l.b16 %v231
    %v372 = vunpack.c.h.b16 %v231
    %v373 = vunpack.c.l.b16 %v232
    %v374 = vunpack.c.h.b16 %v232
    %v375 = vunpack.c.l.b16 %v233
    %v376 = vunpack.c.h.b16 %v233
    %v377 = vunpack.c.l.b16 %v234
    %v378 = vunpack.c.h.b16 %v234
    %v379 = vunpack.c.l.b16 %v235
    %v380 = vunpack.c.h.b16 %v235
    %v381 = vunpack.c.l.b16 %v236
    %v382 = vunpack.c.h.b16 %v236
    %v383 = vunpack.c.l.b16 %v237
    %v384 = vunpack.c.h.b16 %v237
    %v385 = vunpack.c.l.b16 %v238
    %v386 = vunpack.c.h.b16 %v238
    %v387 = vunpack.c.l.b16 %v239
    %v388 = vunpack.c.h.b16 %v239
    %v389 = vunpack.c.l.b16 %v240
    %v390 = vunpack.c.h.b16 %v240
    %v391 = vunpack.c.l.b16 %v241
    %v392 = vunpack.c.h.b16 %v241
    %v393 = vunpack.c.l.b16 %v242
    %v394 = vunpack.c.h.b16 %v242
    %v395 = vunpack.c.l.b16 %v243
    %v396 = vunpack.c.h.b16 %v243
    %v397 = vunpack.c.l.b16 %v244
    %v398 = vunpack.c.h.b16 %v244
    %v399 = vunpack.c.l.b16 %v245
    %v400 = vunpack.c.h.b16 %v245
    %v401 = vunpack.c.l.b16 %v246
    %v402 = vunpack.c.h.b16 %v246
    %v403 = vunpack.c.l.b16 %v247
    %v404 = vunpack.c.h.b16 %v247
    %v405 = vunpack.c.l.b16 %v248
    %v406 = vunpack.c.h.b16 %v248
    %v407 = vunpack.c.l.b16 %v249
    %v408 = vunpack.c.h.b16 %v249
    %v409 = vunpack.c.l.b16 %v250
    %v410 = vunpack.c.h.b16 %v250
    %v411 = vunpack.c.l.b16 %v251
    %v412 = vunpack.c.h.b16 %v251
    %v413 = vunpack.c.l.b16 %v252
    %v414 = vunpack.c.h.b16 %v252
    %v415 = vunpack.c.l.b16 %v253
    %v416 = vunpack.c.h.b16 %v253
    %v417 = vunpack.c.l.b16 %v254
    %v418 = vunpack.c.h.b16 %v254
    %v419 = vunpack.c.l.b16 %v255
    %v420 = vunpack.c.h.b16 %v255
    %v421 = vunpack.c.l.b16 %v256
    %v422 = vunpack.c.h.b16 %v256
    %v423 = vunpack.c.l.b16 %v257
    %v424 = vunpack.c.h.b16 %v257
    %v425 = vunpack.c.l.b16 %v258
    %v426 = vunpack.c.h.b16 %v258
    %v427 = vunpack.c.l.b16 %v259
    %v428 = vunpack.c.h.b16 %v259
    %v429 = vunpack.c.l.b16 %v260
    %v430 = vunpack.c.h.b16 %v260
    %v431 = vunpack.c.l.b16 %v261
    %v432 = vunpack.c.h.b16 %v261
    %v433 = vunpack.c.l.b16 %v262
    %v434 = vunpack.c.h.b16 %v262
    %v435 = vunpack.c.l.b16 %v263
    %v436 = vunpack.c.h.b16 %v263
    %v437 = vunpack.c.l.b16 %v264
    %v438 = vunpack.c.h.b16 %v264
    %v439 = vunpack.c.l.b16 %v265
    %v440 = vunpack.c.h.b16 %v265
    %v441 = vunpack.c.l.b16 %v266
    %v442 = vunpack.c.h.b16 %v266
    %v443 = vunpack.c.l.b16 %v267
    %v444 = vunpack.c.h.b16 %v267
    %v445 = vunpack.c.l.b16 %v268
    %v446 = vunpack.c.h.b16 %v268
    %v447 = vunpack.c.l.b16 %v269
    %v448 = vunpack.c.h.b16 %v269
    %v449 = vunpack.c.l.b16 %v270
    %v450 = vunpack.c.h.b16 %v270
    %v451 = vunpack.c.l.b16 %v271
    %v452 = vunpack.c.h.b16 %v271
    %v453 = vunpack.c.l.b16 %v272
    %v454 = vunpack.c.h.b16 %v272
    %v455 = vunpack.c.l.b16 %v273
    %v456 = vunpack.c.h.b16 %v273
    %v457 = vunpack.c.l.b16 %v274
    %v458 = vunpack.c.h.b16 %v274
    %v459 = vunpack.c.l.b16 %v275
    %v460 = vunpack.c.h.b16 %v275
    %v461 = vunpack.c.l.b16 %v276
    %v462 = vunpack.c.h.b16 %v276
    %v463 = vunpack.c.l.b16 %v277
    %v464 = vunpack.c.h.b16 %v277
    %v465 = vunpack.c.l.b16 %v278
    %v466 = vunpack.c.h.b16 %v278
    %v467 = vunpack.c.l.b16 %v279
    %v468 = vunpack.c.h.b16 %v279
    %v469 = vunpack.c.l.b16 %v280
    %v470 = vunpack.c.h.b16 %v280
    %v471 = vunpack.c.l.b16 %v281
    %v472 = vunpack.c.h.b16 %v281
    %v473 = vunpack.c.l.b16 %v282
    %v474 = vunpack.c.h.b16 %v282
    %v475 = vunpack.c.l.b16 %v283
    %v476 = vunpack.c.h.b16 %v283
    %v477 = vunpack.c.l.b16 %v284
    %v478 = vunpack.c.h.b16 %v284
    %v479 = vunpack.c.l.b16 %v285
    %v480 = vunpack.c.h.b16 %v285
    %v481 = vunpack.c.l.b16 %v286
    %v482 = vunpack.c.h.b16 %v286
    %v483 = vunpack.c.l.b16 %v287
    %v484 = vunpack.c.h.b16 %v287
    %v485 = vunpack.c.l.b16 %v288
    %v486 = vunpack.c.h.b16 %v288
    %v487 = vpack.c.b16 %v361, %v359
    %v488 = vpack.c.b16 %v362, %v360
    %v489 = vpack.c.b16 %v365, %v363
    %v490 = vpack.c.b16 %v366, %v364
    %v491 = vpack.c.b16 %v369, %v367
    %v492 = vpack.c.b16 %v370, %v368
    %v493 = vpack.c.b16 %v373, %v371
    %v494 = vpack.c.b16 %v374, %v372
    %v495 = vpack.c.b16 %v377, %v375
    %v496 = vpack.c.b16 %v378, %v376
    %v497 = vpack.c.b16 %v381, %v379
    %v498 = vpack.c.b16 %v382, %v380
    %v499 = vpack.c.b16 %v385, %v383
    %v500 = vpack.c.b16 %v386, %v384
    %v501 = vpack.c.b16 %v389, %v387
    %v502 = vpack.c.b16 %v390, %v388
    %v503 = vpack.c.b16 %v393, %v391
    %v504 = vpack.c.b16 %v394, %v392
    %v505 = vpack.c.b16 %v397, %v395
    %v506 = vpack.c.b16 %v398, %v396
    %v507 = vpack.c.b16 %v401, %v399
    %v508 = vpack.c.b16 %v402, %v400
    %v509 = vpack.c.b16 %v405, %v403
    %v510 = vpack.c.b16 %v406, %v404
    %v511 = vpack.c.b16 %v409, %v407
    %v512 = vpack.c.b16 %v410, %v408
    %v513 = vpack.c.b16 %v413, %v411
    %v514 = vpack.c.b16 %v414, %v412
    %v515 = vpack.c.b16 %v417, %v415
    %v516 = vpack.c.b16 %v418, %v416
    %v517 = vpack.c.b16 %v421, %v419
    %v518 = vpack.c.b16 %v422, %v420
    %v519 = vpack.c.b16 %v425, %v423
    %v520 = vpack.c.b16 %v426, %v424
    %v521 = vpack.c.b16 %v429, %v427
    %v522 = vpack.c.b16 %v430, %v428
    %v523 = vpack.c.b16 %v433, %v431
    %v524 = vpack.c.b16 %v434, %v432
    %v525 = vpack.c.b16 %v437, %v435
    %v526 = vpack.c.b16 %v438, %v436
    %v527 = vpack.c.b16 %v441, %v439
    %v528 = vpack.c.b16 %v442, %v440
    %v529 = vpack.c.b16 %v445, %v443
    %v530 = vpack.c.b16 %v446, %v444
    %v531 = vpack.c.b16 %v449, %v447
    %v532 = vpack.c.b16 %v450, %v448
    %v533 = vpack.c.b16 %v453, %v451
    %v534 = vpack.c.b16 %v454, %v452
    %v535 = vpack.c.b16 %v457, %v455
    %v536 = vpack.c.b16 %v458, %v456
    %v537 = vpack.c.b16 %v461, %v459
    %v538 = vpack.c.b16 %v462, %v460
    %v539 = vpack.c.b16 %v465, %v463
    %v540 = vpack.c.b16 %v466, %v464
    %v541 = vpack.c.b16 %v469, %v467
    %v542 = vpack.c.b16 %v470, %v468
    %v543 = vpack.c.b16 %v473, %v471
    %v544 = vpack.c.b16 %v474, %v472
    %v545 = vpack.c.b16 %v477, %v475
    %v546 = vpack.c.b16 %v478, %v476
    %v547 = vpack.c.b16 %v481, %v479
    %v548 = vpack.c.b16 %v482, %v480
    %v549 = vpack.c.b16 %v485, %v483
    %v550 = vpack.c.b16 %v486, %v484
    %615 = vmatpush.bf16.msra.mxu0 %v501
    %616 = vmatpush.bf16.msra.mxu0 %v499
    %617 = vmatpush.bf16.msra.mxu0 %v497
    %618 = vmatpush.bf16.msra.mxu0 %v495
    %619 = vmatpush.bf16.msra.mxu0 %v493
    %620 = vmatpush.bf16.msra.mxu0 %v491
    %621 = vmatpush.bf16.msra.mxu0 %v489
    %622 = vmatpush.bf16.msra.mxu0 %v487
    %623 = vmatmul.bf16.gmra.mxu0 %v221
    %v624 = vpop.f32.mrf.mxu0
    %v625 = vadd.f32 %v291, %v624
    %v626 = vpop.f32.mrf.mxu0
    %627 = vdwg.mxu0
    %628 = vmatpush.bf16.msra.mxu0 %v517
    %629 = vmatpush.bf16.msra.mxu0 %v515
    %630 = vmatpush.bf16.msra.mxu0 %v513
    %631 = vmatpush.bf16.msra.mxu0 %v511
    %632 = vmatpush.bf16.msra.mxu0 %v509
    %633 = vmatpush.bf16.msra.mxu0 %v507
    %634 = vmatpush.bf16.msra.mxu0 %v505
    %635 = vmatpush.bf16.msra.mxu0 %v503
    %636 = vmatmul.bf16.gmra.mxu0 %v222
    %v637 = vpop.f32.mrf.mxu0
    %v638 = vadd.f32 %v625, %v637
    %v639 = vpop.f32.mrf.mxu0
    %640 = vdwg.mxu0
    %641 = vmatpush.bf16.msra.mxu0 %v533
    %642 = vmatpush.bf16.msra.mxu0 %v531
    %643 = vmatpush.bf16.msra.mxu0 %v529
    %644 = vmatpush.bf16.msra.mxu0 %v527
    %645 = vmatpush.bf16.msra.mxu0 %v525
    %646 = vmatpush.bf16.msra.mxu0 %v523
    %647 = vmatpush.bf16.msra.mxu0 %v521
    %648 = vmatpush.bf16.msra.mxu0 %v519
    %649 = vmatmul.bf16.gmra.mxu0 %v223
    %v650 = vpop.f32.mrf.mxu0
    %v651 = vadd.f32 %v638, %v650
    %v652 = vpop.f32.mrf.mxu0
    %653 = vdwg.mxu0
    %654 = vmatpush.bf16.msra.mxu0 %v549
    %655 = vmatpush.bf16.msra.mxu0 %v547
    %656 = vmatpush.bf16.msra.mxu0 %v545
    %657 = vmatpush.bf16.msra.mxu0 %v543
    %658 = vmatpush.bf16.msra.mxu0 %v541
    %659 = vmatpush.bf16.msra.mxu0 %v539
    %660 = vmatpush.bf16.msra.mxu0 %v537
    %661 = vmatpush.bf16.msra.mxu0 %v535
    %662 = vmatmul.bf16.gmra.mxu0 %v224
    %v663 = vpop.f32.mrf.mxu0
    %v664 = vadd.f32 %v651, %v663
    %v665 = vpop.f32.mrf.mxu0
    %666 = vdwg.mxu0
    %667 = vmatpush.bf16.msra.mxu0 %v502
    %668 = vmatpush.bf16.msra.mxu0 %v500
    %669 = vmatpush.bf16.msra.mxu0 %v498
    %670 = vmatpush.bf16.msra.mxu0 %v496
    %671 = vmatpush.bf16.msra.mxu0 %v494
    %672 = vmatpush.bf16.msra.mxu0 %v492
    %673 = vmatpush.bf16.msra.mxu0 %v490
    %674 = vmatpush.bf16.msra.mxu0 %v488
    %675 = vmatmul.bf16.gmra.mxu0 %v221
    %v676 = vpop.f32.mrf.mxu0
    %v677 = vadd.f32 %v292, %v676
    %v678 = vpop.f32.mrf.mxu0
    %679 = vdwg.mxu0
    %680 = vmatpush.bf16.msra.mxu0 %v518
    %681 = vmatpush.bf16.msra.mxu0 %v516
    %682 = vmatpush.bf16.msra.mxu0 %v514
    %683 = vmatpush.bf16.msra.mxu0 %v512
    %684 = vmatpush.bf16.msra.mxu0 %v510
    %685 = vmatpush.bf16.msra.mxu0 %v508
    %686 = vmatpush.bf16.msra.mxu0 %v506
    %687 = vmatpush.bf16.msra.mxu0 %v504
    %688 = vmatmul.bf16.gmra.mxu0 %v222
    %v689 = vpop.f32.mrf.mxu0
    %v690 = vadd.f32 %v677, %v689
    %v691 = vpop.f32.mrf.mxu0
    %692 = vdwg.mxu0
    %693 = vmatpush.bf16.msra.mxu0 %v534
    %694 = vmatpush.bf16.msra.mxu0 %v532
    %695 = vmatpush.bf16.msra.mxu0 %v530
    %696 = vmatpush.bf16.msra.mxu0 %v528
    %697 = vmatpush.bf16.msra.mxu0 %v526
    %698 = vmatpush.bf16.msra.mxu0 %v524
    %699 = vmatpush.bf16.msra.mxu0 %v522
    %700 = vmatpush.bf16.msra.mxu0 %v520
    %701 = vmatmul.bf16.gmra.mxu0 %v223
    %v702 = vpop.f32.mrf.mxu0
    %v703 = vadd.f32 %v690, %v702
    %v704 = vpop.f32.mrf.mxu0
    %705 = vdwg.mxu0
    %706 = vmatpush.bf16.msra.mxu0 %v550
    %707 = vmatpush.bf16.msra.mxu0 %v548
    %708 = vmatpush.bf16.msra.mxu0 %v546
    %709 = vmatpush.bf16.msra.mxu0 %v544
    %710 = vmatpush.bf16.msra.mxu0 %v542
    %711 = vmatpush.bf16.msra.mxu0 %v540
    %712 = vmatpush.bf16.msra.mxu0 %v538
    %713 = vmatpush.bf16.msra.mxu0 %v536
    %714 = vmatmul.bf16.gmra.mxu0 %v224
    %v715 = vpop.f32.mrf.mxu0
    %v716 = vadd.f32 %v703, %v715
    %v717 = vpop.f32.mrf.mxu0
    %718 = vdwg.mxu0
    %v719 = vmax.f32 %v664, 0.0
    %v720 = vmax.f32 %v716, 0.0
    %v721 = vpack.c.bf16 %v719, %v719
    %v722 = vpack.c.bf16 %v720, %v720
    %v723 = vld [vmem:[#allocation10] sm:$0xf]
    %v724 = vld [vmem:[#allocation10 + $0x4] sm:$0xf]
    %v725 = vld [vmem:[#allocation10 + $0x8] sm:$0xf]
    %v726 = vld [vmem:[#allocation10 + $0xc] sm:$0xf]
    %v727 = vld [vmem:[#allocation10 + $0x10] sm:$0xf]
    %v728 = vld [vmem:[#allocation10 + $0x14] sm:$0xf]
    %v729 = vld [vmem:[#allocation10 + $0x18] sm:$0xf]
    %v730 = vld [vmem:[#allocation10 + $0x1c] sm:$0xf]
    %v731 = vld [vmem:[#allocation10 + $0x20] sm:$0xf]
    %v732 = vld [vmem:[#allocation10 + $0x24] sm:$0xf]
    %v733 = vld [vmem:[#allocation10 + $0x28] sm:$0xf]
    %v734 = vld [vmem:[#allocation10 + $0x2c] sm:$0xf]
    %v735 = vld [vmem:[#allocation10 + $0x30] sm:$0xf]
    %v736 = vld [vmem:[#allocation10 + $0x34] sm:$0xf]
    %v737 = vld [vmem:[#allocation10 + $0x38] sm:$0xf]
    %v738 = vld [vmem:[#allocation10 + $0x3c] sm:$0xf]
    %v739 = vld [vmem:[#allocation10 + $0x40] sm:$0xf]
    %v740 = vld [vmem:[#allocation10 + $0x44] sm:$0xf]
    %v741 = vld [vmem:[#allocation10 + $0x48] sm:$0xf]
    %v742 = vld [vmem:[#allocation10 + $0x4c] sm:$0xf]
    %v743 = vld [vmem:[#allocation10 + $0x50] sm:$0xf]
    %v744 = vld [vmem:[#allocation10 + $0x54] sm:$0xf]
    %v745 = vld [vmem:[#allocation10 + $0x58] sm:$0xf]
    %v746 = vld [vmem:[#allocation10 + $0x5c] sm:$0xf]
    %v747 = vld [vmem:[#allocation10 + $0x60] sm:$0xf]
    %v748 = vld [vmem:[#allocation10 + $0x64] sm:$0xf]
    %v749 = vld [vmem:[#allocation10 + $0x68] sm:$0xf]
    %v750 = vld [vmem:[#allocation10 + $0x6c] sm:$0xf]
    %v751 = vld [vmem:[#allocation10 + $0x70] sm:$0xf]
    %v752 = vld [vmem:[#allocation10 + $0x74] sm:$0xf]
    %v753 = vld [vmem:[#allocation10 + $0x78] sm:$0xf]
    %v754 = vld [vmem:[#allocation10 + $0x7c] sm:$0xf]
    %v755 = vld [vmem:[%s6] sm:$0x1]
    %v757 = vperm.slane %v755, 0
    %v791 = vunpack.c.l.b16 %v723
    %v792 = vunpack.c.l.b16 %v724
    %v793 = vunpack.c.l.b16 %v725
    %v794 = vunpack.c.l.b16 %v726
    %v795 = vunpack.c.l.b16 %v727
    %v796 = vunpack.c.l.b16 %v728
    %v797 = vunpack.c.l.b16 %v729
    %v798 = vunpack.c.l.b16 %v730
    %v799 = vunpack.c.l.b16 %v731
    %v800 = vunpack.c.l.b16 %v732
    %v801 = vunpack.c.l.b16 %v733
    %v802 = vunpack.c.l.b16 %v734
    %v803 = vunpack.c.l.b16 %v735
    %v804 = vunpack.c.l.b16 %v736
    %v805 = vunpack.c.l.b16 %v737
    %v806 = vunpack.c.l.b16 %v738
    %v807 = vunpack.c.l.b16 %v739
    %v808 = vunpack.c.l.b16 %v740
    %v809 = vunpack.c.l.b16 %v741
    %v810 = vunpack.c.l.b16 %v742
    %v811 = vunpack.c.l.b16 %v743
    %v812 = vunpack.c.l.b16 %v744
    %v813 = vunpack.c.l.b16 %v745
    %v814 = vunpack.c.l.b16 %v746
    %v815 = vunpack.c.l.b16 %v747
    %v816 = vunpack.c.l.b16 %v748
    %v817 = vunpack.c.l.b16 %v749
    %v818 = vunpack.c.l.b16 %v750
    %v819 = vunpack.c.l.b16 %v751
    %v820 = vunpack.c.l.b16 %v752
    %v821 = vunpack.c.l.b16 %v753
    %v822 = vunpack.c.l.b16 %v754
    %v823 = vpack.c.b16 %v792, %v791
    %v824 = vpack.c.b16 %v794, %v793
    %v825 = vpack.c.b16 %v796, %v795
    %v826 = vpack.c.b16 %v798, %v797
    %v827 = vpack.c.b16 %v800, %v799
    %v828 = vpack.c.b16 %v802, %v801
    %v829 = vpack.c.b16 %v804, %v803
    %v830 = vpack.c.b16 %v806, %v805
    %v831 = vpack.c.b16 %v808, %v807
    %v832 = vpack.c.b16 %v810, %v809
    %v833 = vpack.c.b16 %v812, %v811
    %v834 = vpack.c.b16 %v814, %v813
    %v835 = vpack.c.b16 %v816, %v815
    %v836 = vpack.c.b16 %v818, %v817
    %v837 = vpack.c.b16 %v820, %v819
    %v838 = vpack.c.b16 %v822, %v821
    %855 = vmatpush.bf16.msra.mxu0 %v830
    %856 = vmatpush.bf16.msra.mxu0 %v829
    %857 = vmatpush.bf16.msra.mxu0 %v828
    %858 = vmatpush.bf16.msra.mxu0 %v827
    %859 = vmatpush.bf16.msra.mxu0 %v826
    %860 = vmatpush.bf16.msra.mxu0 %v825
    %861 = vmatpush.bf16.msra.mxu0 %v824
    %862 = vmatpush.bf16.msra.mxu0 %v823
    %863 = vmatmul.bf16.gmra.mxu0 %v721
    %v864 = vpop.f32.mrf.mxu0
    %v865 = vadd.f32 %v757, %v864
    %v866 = vpop.f32.mrf.mxu0
    %867 = vdwg.mxu0
    %868 = vmatpush.bf16.msra.mxu0 %v838
    %869 = vmatpush.bf16.msra.mxu0 %v837
    %870 = vmatpush.bf16.msra.mxu0 %v836
    %871 = vmatpush.bf16.msra.mxu0 %v835
    %872 = vmatpush.bf16.msra.mxu0 %v834
    %873 = vmatpush.bf16.msra.mxu0 %v833
    %874 = vmatpush.bf16.msra.mxu0 %v832
    %875 = vmatpush.bf16.msra.mxu0 %v831
    %876 = vmatmul.bf16.gmra.mxu0 %v722
    %v877 = vpop.f32.mrf.mxu0
    %v878 = vadd.f32 %v865, %v877
    %v879 = vpop.f32.mrf.mxu0
    %880 = vdwg.mxu0
    %881 = vst [vmem:[#allocation11] sm:$0xff] %v878
    // Predicated region
    $region50: #{tpu_custom_call.1} parent=1 // pred_check
      _
    $region51: #{tpu_custom_call.1} parent=1 // pred_check_branch
      %883 = sbr.rel (0) target = $region53
    $region52: #{tpu_custom_call.1} parent=1 // pred_region
      %885 = vsyncadd [#allocation4], 0
      %s887 = sshll.u32 [#allocation11], 4
      %s888 = int_to_ptr.vmem [resolvable:$true] %s887
      %s889 = sshll.u32 %s7, 4
      %s890 = int_to_ptr.hbm [resolvable:$true] %s889
      %892 = dma.vmem_to_hbm [thread:$0]  %s888, 128, %s890, [#allocation4]
    $region53: #{tpu_custom_call.1} parent=1 // pred_fallthru
      _
    // Predicated region
    $region54: #{tpu_custom_call.1} parent=1 // pred_check
      _
    $region55: #{tpu_custom_call.1} parent=1 // pred_check_branch
      %894 = sbr.rel (0) target = $region57
    $region56: #{tpu_custom_call.1} parent=1 // pred_region
      %896 = dma.done [#allocation4], 128
    $region57: #{tpu_custom_call.1} parent=1 // pred_fallthru
      _
    %897 = vsyncpa [#allocation3], 1
    %898 = vsyncpa [#allocation6], 1
    %899 = vsyncpa [#allocation9], 1
    %900 = vsyncpa [#allocation4], 1

</llo_original>
